<compile_context>
chip_gen: v7x
topology: tpu7x:2x2x1
jax: 0.10.0
libtpu: 0.0.40
codegen_flags: <defaults>
</compile_context>

<pallas_src>
import functools

import jax
import jax.numpy as jnp
from jax import lax
from jax.experimental import pallas as pl
from jax.experimental.pallas import tpu as pltpu


def _round_up(x, m):
    return (x + m - 1) // m * m


# --------------------------------------------------------------------------
# Small-table fast path: table resident in VMEM, in-VMEM dynamic-slice gather.
# --------------------------------------------------------------------------
def _vmem_gather_kernel(ids_smem, table_ref, out_ref, *, tile):
    # ids_smem : (N_pad,)  int32 ids in SMEM (scalar prefetch)
    # table_ref: (V, D)    whole table, resident in VMEM (constant index map)
    # out_ref  : (tile, D) VMEM output block for this grid step
    base = pl.program_id(0) * tile

    def body(j, carry):
        tok = ids_smem[base + j]                                  # scalar read
        out_ref[pl.ds(j, 1), :] = table_ref[pl.ds(tok, 1), :]     # row copy
        return carry

    # tile is a multiple of 8, so unroll=8 always divides the trip count.
    lax.fori_loop(0, tile, body, 0, unroll=8)


# --------------------------------------------------------------------------
# Large-table path: per-row HBM->HBM DMA gather with bounded lookahead window.
# --------------------------------------------------------------------------
def _hbm_gather_kernel(ids_smem, table_hbm, out_hbm, sem, *, tile, window):
    # ids_smem : (N_pad,)   int32 ids in SMEM (scalar prefetch)
    # table_hbm: (V, D)     embedding table, left in HBM (pl.ANY)
    # out_hbm  : (N_pad, D) output, left in HBM (pl.ANY) -- rows written by DMA
    # sem      : single shared DMA semaphore (all copies are identical size)
    base = pl.program_id(0) * tile
    nw = min(window, tile)

    def start_row(j):
        tok = ids_smem[base + j]
        pltpu.make_async_copy(
            table_hbm.at[pl.ds(tok, 1), :],
            out_hbm.at[pl.ds(base + j, 1), :],
            sem,
        ).start()

    def wait_row():
        # Every started copy moves exactly (1, D) * itemsize bytes, so a
        # reconstructed fixed-size descriptor is a valid wait on the shared
        # counting semaphore (retires "one row", whichever finished).
        pltpu.make_async_copy(
            table_hbm.at[pl.ds(0, 1), :],
            out_hbm.at[pl.ds(base, 1), :],
            sem,
        ).wait()

    # Prologue: fill the lookahead window (static, unrolled).
    for j in range(nw):
        start_row(j)

    # Steady state: retire one row, issue the next.  Trip count (tile - nw)
    # is a multiple of 8 by construction.
    def steady(j, carry):
        wait_row()
        start_row(j + nw)
        return carry

    lax.fori_loop(0, tile - nw, steady, 0, unroll=8)

    # Epilogue: drain the window (static, unrolled).
    for _ in range(nw):
        wait_row()


# --------------------------------------------------------------------------
# Wrapper
# --------------------------------------------------------------------------
_VMEM_TABLE_BUDGET = 8 << 20   # table <= 8 MiB  -> keep the table in VMEM
_NARROW_TABLE_BUDGET = 16 << 20  # D < 128 tables up to 16 MiB also go to VMEM
_VMEM_OUT_BUDGET = 8 << 20     # budget for the double-buffered output block


@functools.partial(jax.jit, static_argnames=("token_tile", "window", "force_hbm_gather"))
def token_embedding(x, table, *, token_tile=256, window=8, force_hbm_gather=False):
    """TokenEmbedding forward: out[b, s, :] = table[x[b, s], :].

    x: (B, S) integer ids; table: (V, D). Returns (B, S, D) in table.dtype.
    """
    B, S = x.shape
    V, D = table.shape
    N = B * S
    itemsize = jnp.dtype(table.dtype).itemsize
    table_bytes = V * D * itemsize

    # Clamp ids ONCE in the wrapper (nn.Embedding would raise; we clamp so no
    # DMA / VMEM read can go out of bounds) -- keeps the scalar-bound inner
    # loops free of per-row clip work.
    ids = jnp.clip(x.reshape(N).astype(jnp.int32), 0, V - 1)

    fits_vmem = table_bytes <= _VMEM_TABLE_BUDGET
    narrow_rows = (D < 128) and (table_bytes <= _NARROW_TABLE_BUDGET)
    use_vmem_table = (not force_hbm_gather) and (fits_vmem or narrow_rows)
    # TODO(synk): huge-vocab tables with D < 128 still fall back to per-row HBM
    # DMAs (sub-512B copies); a vocab-tiled VMEM gather would be better there.

    # --- token tile selection ----------------------------------------------
    #  * big tiles amortize the ~0.35us per-grid-step overhead,
    #  * keep >= 2 tiles when possible so v7x's two TensorCores both get work,
    #  * on the VMEM path, cap the double-buffered (tile, D) output block so it
    #    fits v7x's 64 MiB VMEM (and v5e's scoped default) with headroom.
    tile = min(token_tile, _round_up(pl.cdiv(N, 2), 8))
    if use_vmem_table:
        cap = max(8, (_VMEM_OUT_BUDGET // (2 * D * itemsize)) // 8 * 8)
        tile = min(tile, cap)
    tile = max(8, tile)

    N_pad = _round_up(N, tile)
    if N_pad != N:
        # Pad with token 0 so every padded row is a valid gather (no partial
        # tiles, no per-row pl.when); padded rows are sliced off below.
        ids = jnp.pad(ids, (0, N_pad - N))
    num_tiles = N_pad // tile

    cost = pl.CostEstimate(
        flops=0,
        transcendentals=0,
        bytes_accessed=int(2 * N_pad * D * itemsize + N_pad * 4 + table_bytes),
    )

    if use_vmem_table:
        vmem_limit = int(
            min(64 << 20,
                max(16 << 20,
                    2 * table_bytes + 2 * tile * D * itemsize + (4 << 20)))
        )
        out = pl.pallas_call(
            functools.partial(_vmem_gather_kernel, tile=tile),
            out_shape=jax.ShapeDtypeStruct((N_pad, D), table.dtype),
            grid_spec=pltpu.PrefetchScalarGridSpec(
                num_scalar_prefetch=1,                          # ids -> SMEM
                grid=(num_tiles,),
                in_specs=[
                    # Whole table resident in VMEM; constant block index means
                    # it is copied in once and reused across all grid steps.
                    pl.BlockSpec((V, D), lambda i, ids_ref: (0, 0)),
                ],
                out_specs=pl.BlockSpec((tile, D), lambda i, ids_ref: (i, 0)),
            ),
            compiler_params=pltpu.CompilerParams(
                dimension_semantics=("parallel",),
                vmem_limit_bytes=vmem_limit,
            ),
            cost_estimate=cost,
        )(ids, table)
    else:
        # TODO(synk): for very long sequences (N >~ 64K tokens) pass ids as a
        # per-tile SMEM-blocked input instead of one scalar-prefetched (N,)
        # array (1-D SMEM buffers pad to next_pow2(4N)).
        out = pl.pallas_call(
            functools.partial(_hbm_gather_kernel, tile=tile, window=window),
            out_shape=jax.ShapeDtypeStruct((N_pad, D), table.dtype),
            grid_spec=pltpu.PrefetchScalarGridSpec(
                num_scalar_prefetch=1,                          # ids -> SMEM
                grid=(num_tiles,),
                in_specs=[pl.BlockSpec(memory_space=pl.ANY)],   # table in HBM
                out_specs=pl.BlockSpec(memory_space=pl.ANY),    # rows DMA'd HBM->HBM
                scratch_shapes=[pltpu.SemaphoreType.DMA(())],
            ),
            compiler_params=pltpu.CompilerParams(
                dimension_semantics=("parallel",),
                vmem_limit_bytes=16 << 20,
            ),
            cost_estimate=cost,
        )(ids, table)

    return out[:N].reshape(B, S, D)


if __name__ == "__main__":
    key = jax.random.PRNGKey(0)
    k_tbl, k_ids, k_tbl2, k_ids2 = jax.random.split(key, 4)

    # --- small demo shapes (exercises the VMEM-resident-table fast path) ----
    vocab_size, d_model = 32, 32
    batch, seq = 2, 8

    # nn.Embedding default init: weight ~ N(0, 1)
    embedding_table = jax.random.normal(k_tbl, (vocab_size, d_model), dtype=jnp.float32)
    x = jax.random.randint(k_ids, (batch, seq), 0, vocab_size, dtype=jnp.int32)

    y = token_embedding(x, embedding_table)
    jax.block_until_ready(y)
    assert y.shape == (batch, seq, d_model), y.shape
    assert jnp.allclose(y, embedding_table[x]), "VMEM path mismatch vs reference gather"

    # --- slightly larger problem, forcing the HBM DMA-gather path -----------
    V2, D2, B2, S2 = 256, 256, 2, 32
    table2 = jax.random.normal(k_tbl2, (V2, D2), dtype=jnp.float32)
    x2 = jax.random.randint(k_ids2, (B2, S2), 0, V2, dtype=jnp.int32)

    y2 = token_embedding(x2, table2, force_hbm_gather=True)
    jax.block_until_ready(y2)
    assert y2.shape == (B2, S2, D2), y2.shape
    assert jnp.allclose(y2, table2[x2]), "HBM path mismatch vs reference gather"

    print("KERNEL_OK")
</pallas_src>

<mosaic_0001>
module attributes {stable_mosaic.version = 11 : i64} {
  func.func @_vmem_gather_kernel(%arg0: i32, %arg1: memref<16xi32, #tpu.memory_space<smem>>, %arg2: memref<32x32xf32, #tpu.memory_space<vmem>>, %arg3: memref<8x32xf32, #tpu.memory_space<vmem>>) attributes {dimension_semantics = [#tpu.dimension_semantics<parallel>], iteration_bounds = array<i64: 2>, scalar_prefetch = 1 : i64, scratch_operands = 0 : i64, tpu.core_type = #tpu.core_type<tc>, window_params = [{pipeline_mode = #tpu.pipeline_mode<synchronous>, transform_indices = @transform_0, window_bounds = array<i64: 32, 32>}, {transform_indices = @transform_1, window_bounds = array<i64: 8, 32>}]} {
    %c8_i32 = arith.constant 8 : i32
    %0 = arith.muli %arg0, %c8_i32 : i32
    %c0_i32 = arith.constant 0 : i32
    %1 = arith.addi %0, %c0_i32 : i32
    %2 = arith.index_cast %1 : i32 to index
    %3 = memref.load %arg1[%2] : memref<16xi32, #tpu.memory_space<smem>>
    %4 = arith.index_cast %3 : i32 to index
    %c0 = arith.constant 0 : index
    %5 = vector.load %arg2[%4, %c0] : memref<32x32xf32, #tpu.memory_space<vmem>>, vector<1x32xf32>
    %6 = arith.index_cast %c0_i32 : i32 to index
    %c0_0 = arith.constant 0 : index
    %7 = vector.load %arg3[%6, %c0_0] : memref<8x32xf32, #tpu.memory_space<vmem>>, vector<1x32xf32>
    tpu.vector_store %arg3[%6, %c0_0], %5 {strides = array<i32>} : memref<8x32xf32, #tpu.memory_space<vmem>>, vector<1x32xf32>,
    %c1_i32 = arith.constant 1 : i32
    %8 = arith.addi %0, %c1_i32 : i32
    %9 = arith.index_cast %8 : i32 to index
    %10 = memref.load %arg1[%9] : memref<16xi32, #tpu.memory_space<smem>>
    %11 = arith.index_cast %10 : i32 to index
    %c0_1 = arith.constant 0 : index
    %12 = vector.load %arg2[%11, %c0_1] : memref<32x32xf32, #tpu.memory_space<vmem>>, vector<1x32xf32>
    %13 = arith.index_cast %c1_i32 : i32 to index
    %c0_2 = arith.constant 0 : index
    %14 = vector.load %arg3[%13, %c0_2] : memref<8x32xf32, #tpu.memory_space<vmem>>, vector<1x32xf32>
    tpu.vector_store %arg3[%13, %c0_2], %12 {strides = array<i32>} : memref<8x32xf32, #tpu.memory_space<vmem>>, vector<1x32xf32>,
    %c2_i32 = arith.constant 2 : i32
    %15 = arith.addi %0, %c2_i32 : i32
    %16 = arith.index_cast %15 : i32 to index
    %17 = memref.load %arg1[%16] : memref<16xi32, #tpu.memory_space<smem>>
    %18 = arith.index_cast %17 : i32 to index
    %c0_3 = arith.constant 0 : index
    %19 = vector.load %arg2[%18, %c0_3] : memref<32x32xf32, #tpu.memory_space<vmem>>, vector<1x32xf32>
    %20 = arith.index_cast %c2_i32 : i32 to index
    %c0_4 = arith.constant 0 : index
    %21 = vector.load %arg3[%20, %c0_4] : memref<8x32xf32, #tpu.memory_space<vmem>>, vector<1x32xf32>
    tpu.vector_store %arg3[%20, %c0_4], %19 {strides = array<i32>} : memref<8x32xf32, #tpu.memory_space<vmem>>, vector<1x32xf32>,
    %c3_i32 = arith.constant 3 : i32
    %22 = arith.addi %0, %c3_i32 : i32
    %23 = arith.index_cast %22 : i32 to index
    %24 = memref.load %arg1[%23] : memref<16xi32, #tpu.memory_space<smem>>
    %25 = arith.index_cast %24 : i32 to index
    %c0_5 = arith.constant 0 : index
    %26 = vector.load %arg2[%25, %c0_5] : memref<32x32xf32, #tpu.memory_space<vmem>>, vector<1x32xf32>
    %27 = arith.index_cast %c3_i32 : i32 to index
    %c0_6 = arith.constant 0 : index
    %28 = vector.load %arg3[%27, %c0_6] : memref<8x32xf32, #tpu.memory_space<vmem>>, vector<1x32xf32>
    tpu.vector_store %arg3[%27, %c0_6], %26 {strides = array<i32>} : memref<8x32xf32, #tpu.memory_space<vmem>>, vector<1x32xf32>,
    %c4_i32 = arith.constant 4 : i32
    %29 = arith.addi %0, %c4_i32 : i32
    %30 = arith.index_cast %29 : i32 to index
    %31 = memref.load %arg1[%30] : memref<16xi32, #tpu.memory_space<smem>>
    %32 = arith.index_cast %31 : i32 to index
    %c0_7 = arith.constant 0 : index
    %33 = vector.load %arg2[%32, %c0_7] : memref<32x32xf32, #tpu.memory_space<vmem>>, vector<1x32xf32>
    %34 = arith.index_cast %c4_i32 : i32 to index
    %c0_8 = arith.constant 0 : index
    %35 = vector.load %arg3[%34, %c0_8] : memref<8x32xf32, #tpu.memory_space<vmem>>, vector<1x32xf32>
    tpu.vector_store %arg3[%34, %c0_8], %33 {strides = array<i32>} : memref<8x32xf32, #tpu.memory_space<vmem>>, vector<1x32xf32>,
    %c5_i32 = arith.constant 5 : i32
    %36 = arith.addi %0, %c5_i32 : i32
    %37 = arith.index_cast %36 : i32 to index
    %38 = memref.load %arg1[%37] : memref<16xi32, #tpu.memory_space<smem>>
    %39 = arith.index_cast %38 : i32 to index
    %c0_9 = arith.constant 0 : index
    %40 = vector.load %arg2[%39, %c0_9] : memref<32x32xf32, #tpu.memory_space<vmem>>, vector<1x32xf32>
    %41 = arith.index_cast %c5_i32 : i32 to index
    %c0_10 = arith.constant 0 : index
    %42 = vector.load %arg3[%41, %c0_10] : memref<8x32xf32, #tpu.memory_space<vmem>>, vector<1x32xf32>
    tpu.vector_store %arg3[%41, %c0_10], %40 {strides = array<i32>} : memref<8x32xf32, #tpu.memory_space<vmem>>, vector<1x32xf32>,
    %c6_i32 = arith.constant 6 : i32
    %43 = arith.addi %0, %c6_i32 : i32
    %44 = arith.index_cast %43 : i32 to index
    %45 = memref.load %arg1[%44] : memref<16xi32, #tpu.memory_space<smem>>
    %46 = arith.index_cast %45 : i32 to index
    %c0_11 = arith.constant 0 : index
    %47 = vector.load %arg2[%46, %c0_11] : memref<32x32xf32, #tpu.memory_space<vmem>>, vector<1x32xf32>
    %48 = arith.index_cast %c6_i32 : i32 to index
    %c0_12 = arith.constant 0 : index
    %49 = vector.load %arg3[%48, %c0_12] : memref<8x32xf32, #tpu.memory_space<vmem>>, vector<1x32xf32>
    tpu.vector_store %arg3[%48, %c0_12], %47 {strides = array<i32>} : memref<8x32xf32, #tpu.memory_space<vmem>>, vector<1x32xf32>,
    %c7_i32 = arith.constant 7 : i32
    %50 = arith.addi %0, %c7_i32 : i32
    %51 = arith.index_cast %50 : i32 to index
    %52 = memref.load %arg1[%51] : memref<16xi32, #tpu.memory_space<smem>>
    %53 = arith.index_cast %52 : i32 to index
    %c0_13 = arith.constant 0 : index
    %54 = vector.load %arg2[%53, %c0_13] : memref<32x32xf32, #tpu.memory_space<vmem>>, vector<1x32xf32>
    %55 = arith.index_cast %c7_i32 : i32 to index
    %c0_14 = arith.constant 0 : index
    %56 = vector.load %arg3[%55, %c0_14] : memref<8x32xf32, #tpu.memory_space<vmem>>, vector<1x32xf32>
    tpu.vector_store %arg3[%55, %c0_14], %54 {strides = array<i32>} : memref<8x32xf32, #tpu.memory_space<vmem>>, vector<1x32xf32>,
    %c8_i32_15 = arith.constant 8 : i32
    return
  }
  func.func @transform_0(%arg0: i32, %arg1: memref<16xi32, #tpu.memory_space<smem>>) -> (i32, i32) {
    %c0_i32 = arith.constant 0 : i32
    %c0_i32_0 = arith.constant 0 : i32
    %c0_i32_1 = arith.constant 0 : i32
    return %c0_i32, %c0_i32_0 : i32, i32
  }
  func.func @transform_1(%arg0: i32, %arg1: memref<16xi32, #tpu.memory_space<smem>>) -> (i32, i32) {
    %c0_i32 = arith.constant 0 : i32
    %c0_i32_0 = arith.constant 0 : i32
    return %arg0, %c0_i32 : i32, i32
  }
}

</mosaic_0001>

<llo_original>
// kernel: token_embedding.1
$region0: #{token_embedding.1}
  #allocation0 [shape = 'u32[]', space=smem, size = 0x4, offset = 0x4, fixed_abs, tag = 'smem constant byte address 0x4 - core index']
  #allocation1 [shape = 'u32[144,128]{1,0:T(1,128)}', space=vmem, size = 0x12000, scoped, tag = 'internal scratch']
  #allocation2 [shape = 's32[1]{0}', space=sflag, size = 0x4, scoped, tag = 'scoped memory for token_embedding.1']
  #allocation3 [shape = 'u8[512]{0}', space=smem, size = 0x200, scoped, tag = 'prefetched SMEM operand 0']
  %s0 = inlined_call_operand.vmem [shape: s32[16], index: 0, kind: input, shape index: {}]
  %s1 = inlined_call_operand.hbm [shape: f32[32,32], index: 1, kind: input, shape index: {}]
  %s2 = inlined_call_operand.hbm [shape: f32[16,32], index: 2, kind: output, shape index: {}]
  %s3 = sld [smem:[#allocation0]]
  $region41: #{token_embedding.1} parent=0
    _
  %s5 = ssub.s32 1, %s3
  %s6 = scalar_select 0, %s5, %s3
  %s7 = sshll.u32 %s0, 4
  %s8 = int_to_ptr.vmem [resolvable:$true] %s7
  %10 = dma.vmem_to_smem %s8, 16, [#allocation3], [#allocation2]
  %11 = dma.done [#allocation2], 16
  %12 = sfence
  $region1: #{token_embedding.1} parent=0
    #allocation4 [shape = 'u8[16384]{0}', space=vmem, size = 0x4000, scoped, tag = 'input window, operand 1, single buffered']
    #allocation5 [shape = 's32[2]{0}', space=sflag, size = 0x8, scoped, tag = 'scoped memory for token_embedding.1']
    #allocation6 [shape = 's32[2]{0}', space=sflag, size = 0x8, scoped, tag = 'scoped memory for token_embedding.1']
    #allocation7 [shape = 'u8[8192]{0}', space=vmem, size = 0x2000, scoped, tag = 'output window, operand 0']
    %13 = vsyncpa [#allocation5], 0
    %14 = vsyncpa [#allocation6], 0
    %s15 = scalar_lea.sflag [#allocation6], 1
    %16 = vsyncpa %s15, 0
    loop: start=0, step=1, limit=4
    $region2: #{token_embedding.1} parent=1 // loop_pre_header
      _
    $region3: #{token_embedding.1} parent=1 // loop_header
      %s18 = sphi 0, %s22
      %p19 = scmp.ge.s32.totalorder %s18, 4
      %s26 = sphi 0, %s26
      %s28 = sphi 0, %s26
      %s29 = sphi 0, %s28
      %s43 = sphi 0, %s29
      %s49 = sphi 0, %s51
      %s52 = sphi 0, %s49
      %s53 = sphi 0, %s52
      %s69 = sphi 0, %s53
    $region4: #{token_embedding.1} parent=1 // loop_header_branch
      %21 = sbr.rel (%p19) target = $region8
    $region5: #{token_embedding.1} parent=1 // loop_body
      %s23 = ssub.s32 %s18, 1
      %s24 = ssub.s32 %s18, 2
      %s25 = sadd.s32 %s18, 1
      %s27 = sadd.s32 %s26, 1
      %p30 = scmp.eq.s32.totalorder %s18, 1
      %p31 = scmp.ne.s32.totalorder %s26, %s28
      %p32 = scmp.eq.s32.totalorder %s18, 0
      %p33 = por %p31, %p32
      %p34 = scmp.ne.s32.totalorder %s26, %s28
      %p35 = scmp.eq.s32.totalorder %s23, 1
      %p36 = por %p34, %p35
      %p37 = scmp.ne.s32.totalorder %s28, %s29
      %p38 = scmp.eq.s32.totalorder %s23, 0
      %p39 = por %p37, %p38
      %p40 = scmp.ne.s32.totalorder %s28, %s29
      %p41 = scmp.eq.s32.totalorder %s24, 1
      %p42 = por %p40, %p41
      %p44 = scmp.ne.s32.totalorder %s29, %s43
      %p45 = scmp.eq.s32.totalorder %s24, 0
      %p46 = por %p44, %p45
      %s47 = ssub.s32 %s18, %s25
      %p48 = scmp.eq.s32.totalorder %s47, 0
      %s50 = sadd.s32 %s49, 1
      %s51 = scalar_select %p48, %s49, %s50
      %p54 = pneg %p48
      %p55 = scmp.eq.s32.totalorder %s18, 1
      %p56 = por %p54, %p55
      %p57 = scmp.ne.s32.totalorder %s49, %s52
      %p58 = scmp.eq.s32.totalorder %s18, 0
      %p59 = por %p57, %p58
      %p60 = scmp.ne.s32.totalorder %s49, %s52
      %p61 = scmp.eq.s32.totalorder %s23, 1
      %p62 = por %p60, %p61
      %p63 = scmp.ne.s32.totalorder %s52, %s53
      %p64 = scmp.eq.s32.totalorder %s23, 0
      %p65 = por %p63, %p64
      %p66 = scmp.ne.s32.totalorder %s52, %s53
      %p67 = scmp.eq.s32.totalorder %s24, 1
      %p68 = por %p66, %p67
      %p70 = scmp.ne.s32.totalorder %s53, %s69
      %p71 = scmp.eq.s32.totalorder %s24, 0
      %p72 = por %p70, %p71
      %p73 = scmp.le.s32.totalorder 1, %s18
      %p74 = scmp.lt.s32.totalorder %s18, 3
      %p75 = pnand %p73, %p74
      %p76 = pneg %p75
      // Predicated region
      $region9: #{token_embedding.1} parent=5 // pred_check
        _
      $region10: #{token_embedding.1} parent=5 // pred_check_branch
        %78 = sbr.rel (%p75) target = $region12
      $region11: #{token_embedding.1} parent=5 // pred_region
        %s79 = ssub.s32 %s18, 1
        // Predicated region
        $region13: #{token_embedding.1} parent=11 // pred_check
          %p80 = pneg %p39
        $region14: #{token_embedding.1} parent=11 // pred_check_branch
          %82 = sbr.rel (%p80) target = $region16
        $region15: #{token_embedding.1} parent=11 // pred_region
          %s84 = ssub.s32 512, 512
          %85 = vsyncadd [#allocation5], %s84
          %s86 = sshll.u32 [#allocation4], 4
          %s87 = int_to_ptr.vmem [resolvable:$true] %s86
          %92 = dma.hbm_to_vmem [thread:$0]  %s1, 512, %s87, [#allocation5], 128, 128, 8
        $region16: #{token_embedding.1} parent=11 // pred_fallthru
          _
      $region12: #{token_embedding.1} parent=5 // pred_fallthru
        _
      %p93 = scmp.lt.s32.totalorder %s18, 2
      // Predicated region
      $region17: #{token_embedding.1} parent=5 // pred_check
        %p94 = pneg %p93
      $region18: #{token_embedding.1} parent=5 // pred_check_branch
        %96 = sbr.rel (%p94) target = $region20
      $region19: #{token_embedding.1} parent=5 // pred_region
        _
      $region20: #{token_embedding.1} parent=5 // pred_fallthru
        _
      %p97 = scmp.le.s32.totalorder 1, %s18
      %p98 = scmp.lt.s32.totalorder %s18, 3
      %p99 = pnand %p97, %p98
      %p100 = pneg %p99
      // Predicated region
      $region21: #{token_embedding.1} parent=5 // pred_check
        _
      $region22: #{token_embedding.1} parent=5 // pred_check_branch
        %102 = sbr.rel (%p99) target = $region24
      $region23: #{token_embedding.1} parent=5 // pred_region
        %s103 = ssub.s32 %s18, 1
        // Predicated region
        $region25: #{token_embedding.1} parent=23 // pred_check
          %p104 = pneg %p39
        $region26: #{token_embedding.1} parent=23 // pred_check_branch
          %106 = sbr.rel (%p104) target = $region28
        $region27: #{token_embedding.1} parent=23 // pred_region
          %107 = dma.done [#allocation5], 512
        $region28: #{token_embedding.1} parent=23 // pred_fallthru
          _
        %p108 = pneg %p39
        %p109 = pneg %p36
        %p110 = pneg %p65
        %p111 = pneg %p62
        %s112 = sand.u32 %s52, 1
        %s113 = scalar_lea.sflag [#allocation6], %s112
        %s114 = sand.u32 %s52, 1
        %s115 = smul.addr %s114, 8
        %s116 = scalar_lea.vmem [#allocation7], %s115
        %s117 = smul.u32 %s23, 8
        %s118 = sld [smem:[#allocation3 + %s117]]
        %s119 = scalar_lea.vmem [#allocation4], %s118
        %v120 = vld [vmem:[%s119] sm:$0x1]
        %vm121 = vcmask 253952
        %122 = vst.msk [vmem:[%s116] sm:$0x1] %vm121, %v120
        %s123 = sadd.s32 %s117, 1
        %s124 = sld [smem:[#allocation3 + %s123]]
        %s125 = scalar_lea.vmem [#allocation4], %s124
        %v126 = vld [vmem:[%s125] sm:$0x1]
        %127 = vst.msk [vmem:[%s116 + $0x1] sm:$0x1] %vm121, %v126
        %s128 = sadd.s32 %s117, 2
        %s129 = sld [smem:[#allocation3 + %s128]]
        %s130 = scalar_lea.vmem [#allocation4], %s129
        %v131 = vld [vmem:[%s130] sm:$0x1]
        %132 = vst.msk [vmem:[%s116 + $0x2] sm:$0x1] %vm121, %v131
        %s133 = sadd.s32 %s117, 3
        %s134 = sld [smem:[#allocation3 + %s133]]
        %s135 = scalar_lea.vmem [#allocation4], %s134
        %v136 = vld [vmem:[%s135] sm:$0x1]
        %137 = vst.msk [vmem:[%s116 + $0x3] sm:$0x1] %vm121, %v136
        %s138 = sadd.s32 %s117, 4
        %s139 = sld [smem:[#allocation3 + %s138]]
        %s140 = scalar_lea.vmem [#allocation4], %s139
        %v141 = vld [vmem:[%s140] sm:$0x1]
        %142 = vst.msk [vmem:[%s116 + $0x4] sm:$0x1] %vm121, %v141
        %s143 = sadd.s32 %s117, 5
        %s144 = sld [smem:[#allocation3 + %s143]]
        %s145 = scalar_lea.vmem [#allocation4], %s144
        %v146 = vld [vmem:[%s145] sm:$0x1]
        %147 = vst.msk [vmem:[%s116 + $0x5] sm:$0x1] %vm121, %v146
        %s148 = sadd.s32 %s117, 6
        %s149 = sld [smem:[#allocation3 + %s148]]
        %s150 = scalar_lea.vmem [#allocation4], %s149
        %v151 = vld [vmem:[%s150] sm:$0x1]
        %152 = vst.msk [vmem:[%s116 + $0x6] sm:$0x1] %vm121, %v151
        %s153 = sadd.s32 %s117, 7
        %s154 = sld [smem:[#allocation3 + %s153]]
        %s155 = scalar_lea.vmem [#allocation4], %s154
        %v156 = vld [vmem:[%s155] sm:$0x1]
        %157 = vst.msk [vmem:[%s116 + $0x7] sm:$0x1] %vm121, %v156
        %s158 = sand.u32 %s52, 1
        %s159 = scalar_lea.sflag [#allocation6], %s158
        %s160 = sand.u32 %s52, 1
        %s161 = smul.addr %s160, 8
        %s162 = scalar_lea.vmem [#allocation7], %s161
        // Predicated region
        $region29: #{token_embedding.1} parent=23 // pred_check
          %p163 = pneg %p62
        $region30: #{token_embedding.1} parent=23 // pred_check_branch
          %165 = sbr.rel (%p163) target = $region32
        $region31: #{token_embedding.1} parent=23 // pred_region
          %s167 = ssub.s32 128, 128
          %168 = vsyncadd %s159, %s167
          %s169 = smul.addr %s23, 128
          %s170 = scalar_lea.hbm %s2, %s169
          %s172 = sshll.u32 %s162, 4
          %s173 = int_to_ptr.vmem [resolvable:$true] %s172
          %175 = dma.vmem_to_hbm [thread:$0]  %s173, 128, %s170, %s159
        $region32: #{token_embedding.1} parent=23 // pred_fallthru
          _
      $region24: #{token_embedding.1} parent=5 // pred_fallthru
        _
      %p176 = scmp.le.s32.totalorder 2, %s18
      // Predicated region
      $region33: #{token_embedding.1} parent=5 // pred_check
        %p177 = pneg %p176
      $region34: #{token_embedding.1} parent=5 // pred_check_branch
        %179 = sbr.rel (%p177) target = $region36
      $region35: #{token_embedding.1} parent=5 // pred_region
        %s180 = ssub.s32 %s18, 2
        // Predicated region
        $region37: #{token_embedding.1} parent=35 // pred_check
          %p181 = pneg %p68
        $region38: #{token_embedding.1} parent=35 // pred_check_branch
          %183 = sbr.rel (%p181) target = $region40
        $region39: #{token_embedding.1} parent=35 // pred_region
          %s184 = sand.u32 %s53, 1
          %s185 = scalar_lea.sflag [#allocation6], %s184
          %s186 = sand.u32 %s53, 1
          %s187 = smul.addr %s186, 8
          %s188 = scalar_lea.vmem [#allocation7], %s187
          %189 = dma.done %s185, 128
        $region40: #{token_embedding.1} parent=35 // pred_fallthru
          _
      $region36: #{token_embedding.1} parent=5 // pred_fallthru
        _
    $region6: #{token_embedding.1} parent=1 // loop_footer
      %s22 = sadd.s32 1, %s18
    $region7: #{token_embedding.1} parent=1 // loop_footer_branch
      %17 = sbr.rel target = $region3
    $region8: #{token_embedding.1} parent=1 // loop_exit
      _
    %190 = vsyncpa [#allocation5], 1
    %s191 = scalar_lea.sflag [#allocation5], 1
    %192 = vsyncpa %s191, 1
    %193 = vsyncpa [#allocation6], 1
    %s194 = scalar_lea.sflag [#allocation6], 1
    %195 = vsyncpa %s194, 1

</llo_original>
